<compile_context>
chip_gen: v7x
topology: tpu7x:2x2x1
jax: 0.10.0
libtpu: 0.0.40
codegen_flags: <defaults>
</compile_context>

<pallas_src>
import functools
import math

import jax
import jax.numpy as jnp
from jax import lax
from jax.experimental import pallas as pl
from jax.experimental.pallas import tpu as pltpu


# ----------------------------------------------------------------------------
# Small helpers
# ----------------------------------------------------------------------------
def _round_up(x, m):
    return ((x + m - 1) // m) * m


def _pick_divisor_tile(dim, cands=(512, 256, 128)):
    """Largest candidate tile dividing `dim`, else the full dim (full-dim
    blocks are always layout-legal)."""
    for c in cands:
        if dim % c == 0:
            return c
    return dim


def _seq_tile(n, cands=(512, 256, 128)):
    for c in cands:
        if n >= c:
            return c
    return _round_up(max(n, 1), 8)


@functools.lru_cache(maxsize=1)
def _vmem_capacity():
    try:
        return int(pltpu.get_tpu_info().vmem_capacity_bytes)
    except Exception:
        return 64 * 1024 * 1024      # conservative (v7x) fallback


def _vmem_limit(estimate, cap):
    # headroom below physical VMEM; never below the 32 MiB scoped default
    return int(max(32 << 20, min(int(0.8 * cap), 2 * estimate + (8 << 20))))


# ----------------------------------------------------------------------------
# Tiled linear:  y = x @ w_t + b   (bf16 MXU operands, f32 accumulation)
# ----------------------------------------------------------------------------
def linear_kernel(x_ref, w_ref, b_ref, o_ref, acc_ref):
    @pl.when(pl.program_id(2) == 0)
    def _():
        acc_ref[...] = jnp.zeros_like(acc_ref)

    acc_ref[...] += jnp.dot(
        x_ref[...].astype(jnp.bfloat16), w_ref[...],
        preferred_element_type=jnp.float32,
    )

    @pl.when(pl.program_id(2) == pl.num_programs(2) - 1)
    def _():
        o_ref[...] = (acc_ref[...] + b_ref[...]).astype(o_ref.dtype)


def pallas_linear(x2d, w_t, b, out_dtype=None):
    """x2d: (M, K) f32/bf16, w_t: (K, N) bf16, b: (N,) f32."""
    M, K = x2d.shape
    N = w_t.shape[1]
    out_dtype = jnp.dtype(out_dtype or x2d.dtype)
    cap = _vmem_capacity()

    tn = _pick_divisor_tile(N)
    tk = _pick_divisor_tile(K)
    Mp = _round_up(M, 8) if M <= 128 else _round_up(M, 128)
    tm = _pick_divisor_tile(Mp)

    def est(tm_, tn_, tk_):
        return (2 * tm_ * tk_ * x2d.dtype.itemsize       # x (double-buffered)
                + 2 * tk_ * tn_ * w_t.dtype.itemsize     # w
                + 2 * tn_ * 4                            # bias
                + 2 * tm_ * tn_ * out_dtype.itemsize     # out
                + tm_ * tn_ * 4)                         # f32 accumulator

    while est(tm, tn, tk) > 0.6 * cap and tm > 128:
        tm //= 2
    # TODO(synk): also pad/tile N and K for very large d_model not divisible
    # by 128; the full-dim fallback block can exceed VMEM on v7x.

    if Mp != M:
        x2d = jnp.pad(x2d, ((0, Mp - M), (0, 0)))

    out = pl.pallas_call(
        linear_kernel,
        out_shape=jax.ShapeDtypeStruct((Mp, N), out_dtype),
        grid_spec=pltpu.PrefetchScalarGridSpec(
            num_scalar_prefetch=0,
            grid=(Mp // tm, N // tn, K // tk),
            in_specs=[
                pl.BlockSpec((tm, tk), lambda i, j, k: (i, k)),
                pl.BlockSpec((tk, tn), lambda i, j, k: (k, j)),
                pl.BlockSpec((1, tn), lambda i, j, k: (0, j)),
            ],
            out_specs=pl.BlockSpec((tm, tn), lambda i, j, k: (i, j)),
            scratch_shapes=[pltpu.VMEM((tm, tn), jnp.float32)],
        ),
        compiler_params=pltpu.CompilerParams(
            dimension_semantics=("parallel", "parallel", "arbitrary"),
            vmem_limit_bytes=_vmem_limit(est(tm, tn, tk), cap),
        ),
    )(x2d, w_t, b.reshape(1, -1).astype(jnp.float32))
    return out[:M] if Mp != M else out


# ----------------------------------------------------------------------------
# Flash multi-head attention, heads packed on the lane dim, optional fused
# output projection.
# ----------------------------------------------------------------------------
def mha_flash_kernel(*args, n_head, d_k, nk_valid, tk, fuse_out):
    if fuse_out:
        q_ref, k_ref, v_ref, ow_ref, ob_ref, o_ref, m_sc, l_sc, acc_sc = args
    else:
        q_ref, k_ref, v_ref, o_ref, m_sc, l_sc, acc_sc = args
        ow_ref = ob_ref = None

    ki = pl.program_id(2)
    tq = q_ref.shape[0]

    @pl.when(ki == 0)
    def _():
        m_sc[...] = jnp.full_like(m_sc, -jnp.inf)
        l_sc[...] = jnp.zeros_like(l_sc)
        acc_sc[...] = jnp.zeros_like(acc_sc)

    if nk_valid is not None:   # key-padding mask, only compiled in when needed
        col = ki * tk + lax.broadcasted_iota(jnp.int32, (tq, tk), 1)
        mask_bias = jnp.where(col < nk_valid, 0.0, -jnp.inf).astype(jnp.float32)
    else:
        mask_bias = None

    for h in range(n_head):                       # static unroll over heads
        sl = slice(h * d_k, (h + 1) * d_k)
        q_h = q_ref[:, sl]                        # (tq, d_k) bf16 (ref slice)
        k_h = k_ref[:, sl]                        # (tk, d_k) bf16

        # Contract d_k of both operands -> no explicit k.T. Scale is already
        # folded into the Q projection weights.
        s = lax.dot_general(
            q_h, k_h,
            dimension_numbers=(((1,), (1,)), ((), ())),
            preferred_element_type=jnp.float32,
        )                                         # (tq, tk) f32
        if mask_bias is not None:
            s = s + mask_bias

        m_prev = m_sc[:, h:h + 1]                 # (tq, 1)
        m_new = jnp.maximum(m_prev, jnp.max(s, axis=-1, keepdims=True))
        alpha = jnp.exp(m_prev - m_new)
        p = jnp.exp((s - m_new).astype(jnp.bfloat16))   # bf16 EUP path
        l_sc[:, h:h + 1] = alpha * l_sc[:, h:h + 1] + jnp.sum(
            p.astype(jnp.float32), axis=-1, keepdims=True)
        acc_sc[:, sl] = alpha * acc_sc[:, sl] + jnp.dot(
            p, v_ref[:, sl], preferred_element_type=jnp.float32)
        m_sc[:, h:h + 1] = m_new

    @pl.when(ki == pl.num_programs(2) - 1)
    def _():
        # Normalize each head in place (acc stays packed as (tq, d_model)).
        for h in range(n_head):
            sl = slice(h * d_k, (h + 1) * d_k)
            inv_l = pl.reciprocal(l_sc[:, h:h + 1], approx=False)
            acc_sc[:, sl] = acc_sc[:, sl] * inv_l
        attn = acc_sc[...]                        # (tq, d_model) f32
        if fuse_out:
            y = jnp.dot(attn.astype(jnp.bfloat16), ow_ref[...],
                        preferred_element_type=jnp.float32) + ob_ref[...]
            o_ref[...] = y.astype(o_ref.dtype)    # single lane-dense store
        else:
            o_ref[...] = attn.astype(o_ref.dtype)


def pallas_attention(q, k, v, n_head, out_w=None, out_b=None,
                     out_dtype=jnp.float32):
    """q: (B, Nq, d_model) bf16, k/v: (B, Nk, d_model) bf16.
    If out_w/out_b are given, the output projection is fused in."""
    B, Nq, d_model = q.shape
    Nk = k.shape[1]
    d_k = d_model // n_head
    fuse_out = out_w is not None
    cap = _vmem_capacity()
    out_dtype = jnp.dtype(out_dtype)

    tq = _seq_tile(Nq)
    tk = _seq_tile(Nk)

    def est(tq_, tk_):
        by = 2 * tq_ * d_model * q.dtype.itemsize           # q blocks
        by += 2 * 2 * tk_ * d_model * k.dtype.itemsize       # k, v blocks
        by += 2 * tq_ * d_model * out_dtype.itemsize         # out blocks
        if fuse_out:
            by += d_model * d_model * out_w.dtype.itemsize + d_model * 4
        by += tq_ * d_model * 4                               # acc scratch
        by += 2 * tq_ * max(128, n_head) * 4                  # m, l scratch
        return by

    # VMEM-aware tile shrink (matters on v7x's 64 MiB for large d_model).
    while est(tq, tk) > 0.6 * cap:
        if tk > 128 and tk >= tq:
            tk //= 2
        elif tq > 128:
            tq //= 2
        else:
            break

    Nq_pad = _round_up(Nq, tq)
    Nk_pad = _round_up(Nk, tk)
    nk_valid = Nk if Nk_pad != Nk else None
    if Nq_pad != Nq:
        q = jnp.pad(q, ((0, 0), (0, Nq_pad - Nq), (0, 0)))
    if Nk_pad != Nk:
        k = jnp.pad(k, ((0, 0), (0, Nk_pad - Nk), (0, 0)))
        v = jnp.pad(v, ((0, 0), (0, Nk_pad - Nk), (0, 0)))

    sq = pl.Squeezed()
    kern = functools.partial(
        mha_flash_kernel, n_head=n_head, d_k=d_k,
        nk_valid=nk_valid, tk=tk, fuse_out=fuse_out)

    in_specs = [
        pl.BlockSpec((sq, tq, d_model), lambda b, qi, ki: (b, qi, 0)),
        pl.BlockSpec((sq, tk, d_model), lambda b, qi, ki: (b, ki, 0)),
        pl.BlockSpec((sq, tk, d_model), lambda b, qi, ki: (b, ki, 0)),
    ]
    args = [q, k, v]
    if fuse_out:
        in_specs += [
            pl.BlockSpec((d_model, d_model), lambda b, qi, ki: (0, 0)),
            pl.BlockSpec((1, d_model), lambda b, qi, ki: (0, 0)),
        ]
        args += [out_w, out_b.reshape(1, -1).astype(jnp.float32)]

    # TODO(synk): add a head-group grid axis (block the packed lane dim into
    # groups of g*d_k) for very large n_head*d_k on v7x.
    out = pl.pallas_call(
        kern,
        out_shape=jax.ShapeDtypeStruct((B, Nq_pad, d_model), out_dtype),
        grid_spec=pltpu.PrefetchScalarGridSpec(
            num_scalar_prefetch=0,
            grid=(B, Nq_pad // tq, Nk_pad // tk),
            in_specs=in_specs,
            out_specs=pl.BlockSpec((sq, tq, d_model),
                                   lambda b, qi, ki: (b, qi, 0)),
            scratch_shapes=[
                pltpu.VMEM((tq, n_head), jnp.float32),    # running max (cols)
                pltpu.VMEM((tq, n_head), jnp.float32),    # running sum (cols)
                pltpu.VMEM((tq, d_model), jnp.float32),   # packed output acc
            ],
        ),
        compiler_params=pltpu.CompilerParams(
            dimension_semantics=("parallel", "parallel", "arbitrary"),
            vmem_limit_bytes=_vmem_limit(est(tq, tk), cap),
        ),
    )(*args)
    if Nq_pad != Nq:
        out = out[:, :Nq, :]
    return out


# ----------------------------------------------------------------------------
# Module forward
# ----------------------------------------------------------------------------
def multihead_attention(params, query, key, value, n_head):
    B, Nq, d_model = query.shape
    assert d_model % n_head == 0, "d_model must be divisible by n_head"
    d_k = d_model // n_head
    scale = d_k ** (-0.5)

    # Projection specs with the softmax scale folded into the Q projection.
    proj_specs = [
        ("q", query, params["wq_w"] * scale, params["wq_b"] * scale),
        ("k", key, params["wk_w"], params["wk_b"]),
        ("v", value, params["wv_w"], params["wv_b"]),
    ]
    # Group by input-tensor identity: self-attention -> one fused QKV matmul,
    # shared key/value -> fused KV matmul, otherwise three projections.
    groups = []
    for item in proj_specs:
        for g in groups:
            if g[0] is item[1]:
                g[1].append(item)
                break
        else:
            groups.append((item[1], [item]))

    projected = {}
    for x, items in groups:
        w_cat = jnp.concatenate([w for (_, _, w, _) in items],
                                axis=1).astype(jnp.bfloat16)
        b_cat = jnp.concatenate([b for (_, _, _, b) in items],
                                axis=0).astype(jnp.float32)
        Bx, Nx, _ = x.shape
        y = pallas_linear(x.reshape(Bx * Nx, d_model), w_cat, b_cat,
                          out_dtype=jnp.bfloat16)
        off = 0
        for (name, _, w, _) in items:
            n_out = w.shape[1]
            projected[name] = y[:, off:off + n_out].reshape(Bx, Nx, n_out)
            off += n_out
    Q, K, V = projected["q"], projected["k"], projected["v"]

    # Fuse the output projection into the attention finalize when the bf16
    # out_w tile fits comfortably in VMEM (<= cap/4).
    fuse_out = (d_model * d_model * 2) <= _vmem_capacity() // 4
    if fuse_out:
        out = pallas_attention(
            Q, K, V, n_head,
            out_w=params["out_w"].astype(jnp.bfloat16),
            out_b=params["out_b"],
            out_dtype=query.dtype)
    else:
        attn = pallas_attention(Q, K, V, n_head, out_dtype=jnp.bfloat16)
        out = pallas_linear(
            attn.reshape(B * Nq, d_model),
            params["out_w"].astype(jnp.bfloat16),
            params["out_b"], out_dtype=query.dtype).reshape(B, Nq, d_model)
    # dropout p = 0.0 -> identity (skipped)
    return out


# ----------------------------------------------------------------------------
# Deterministic parameter init (xavier_uniform like the torch module)
# ----------------------------------------------------------------------------
def init_params(key, d_model):
    bound_w = math.sqrt(6.0 / (d_model + d_model))   # xavier_uniform, gain=1
    bound_b = 1.0 / math.sqrt(d_model)               # torch default bias init
    names = ["wq", "wk", "wv", "out"]
    params = {}
    keys = jax.random.split(key, 2 * len(names))
    for i, name in enumerate(names):
        w = jax.random.uniform(
            keys[2 * i], (d_model, d_model), jnp.float32, -bound_w, bound_w)
        b = jax.random.uniform(
            keys[2 * i + 1], (d_model,), jnp.float32, -bound_b, bound_b)
        params[f"{name}_w"] = w.T        # stored (in, out) so kernels do x @ w
        params[f"{name}_b"] = b
    return params


# ----------------------------------------------------------------------------
# Pure-JAX f32 reference for verification
# ----------------------------------------------------------------------------
def reference(params, query, key, value, n_head):
    B, Nq, d_model = query.shape
    d_k = d_model // n_head

    def proj(x, w_t, b):
        y = x @ w_t + b
        return jnp.transpose(y.reshape(B, -1, n_head, d_k), (0, 2, 1, 3))

    Q = proj(query, params["wq_w"], params["wq_b"])
    K = proj(key, params["wk_w"], params["wk_b"])
    V = proj(value, params["wv_w"], params["wv_b"])
    s = jnp.einsum("bhqd,bhkd->bhqk", Q, K) * d_k ** (-0.5)
    attn = jax.nn.softmax(s, axis=-1)
    o = jnp.einsum("bhqk,bhkd->bhqd", attn, V)
    o = jnp.transpose(o, (0, 2, 1, 3)).reshape(B, Nq, d_model)
    return o @ params["out_w"] + params["out_b"]


if __name__ == "__main__":
    B, N_q, N_k, d_model, n_head = 2, 8, 8, 32, 4

    root = jax.random.PRNGKey(0)
    k_p, k_q, k_k, k_v = jax.random.split(root, 4)
    params = init_params(k_p, d_model)
    query = jax.random.normal(k_q, (B, N_q, d_model), jnp.float32)
    key_in = jax.random.normal(k_k, (B, N_k, d_model), jnp.float32)
    value = jax.random.normal(k_v, (B, N_k, d_model), jnp.float32)

    tol = dict(atol=5e-2, rtol=5e-2)   # bf16 MXU operands vs f32 reference

    # 1) cross-attention with three distinct inputs
    out = jax.block_until_ready(
        multihead_attention(params, query, key_in, value, n_head))
    ref = reference(params, query, key_in, value, n_head)
    assert out.shape == (B, N_q, d_model)
    assert jnp.allclose(out, ref, **tol), "cross-attention mismatch"

    # 2) self-attention (query is key is value) -> fused QKV projection path
    out2 = jax.block_until_ready(
        multihead_attention(params, query, query, query, n_head))
    ref2 = reference(params, query, query, query, n_head)
    assert jnp.allclose(out2, ref2, **tol), "self-attention mismatch"

    # 3) unaligned key length -> key padding + in-kernel mask path
    key_s, val_s = key_in[:, :6, :], value[:, :6, :]
    out3 = jax.block_until_ready(
        multihead_attention(params, query, key_s, val_s, n_head))
    ref3 = reference(params, query, key_s, val_s, n_head)
    assert jnp.allclose(out3, ref3, **tol), "masked attention mismatch"

    print("KERNEL_OK")
</pallas_src>

<mosaic_0001>
module attributes {stable_mosaic.version = 11 : i64} {
  func.func @linear_kernel(%arg0: i32, %arg1: i32, %arg2: i32, %arg3: memref<16x32xf32, #tpu.memory_space<vmem>>, %arg4: memref<32x32xbf16, #tpu.memory_space<vmem>>, %arg5: memref<1x32xf32, #tpu.memory_space<vmem>>, %arg6: memref<16x32xbf16, #tpu.memory_space<vmem>>, %arg7: memref<16x32xf32, #tpu.memory_space<vmem>>) attributes {dimension_semantics = [#tpu.dimension_semantics<parallel>, #tpu.dimension_semantics<parallel>, #tpu.dimension_semantics<arbitrary>], iteration_bounds = array<i64: 1, 1, 1>, scalar_prefetch = 0 : i64, scratch_operands = 1 : i64, tpu.core_type = #tpu.core_type<tc>, window_params = [{transform_indices = @transform_0, window_bounds = array<i64: 16, 32>}, {transform_indices = @transform_1, window_bounds = array<i64: 32, 32>}, {transform_indices = @transform_2, window_bounds = array<i64: 1, 32>}, {transform_indices = @transform_3, window_bounds = array<i64: 16, 32>}]} {
    %c0_i32 = arith.constant 0 : i32
    %0 = arith.cmpi eq, %arg2, %c0_i32 : i32
    %1 = arith.extui %0 : i1 to i32
    %c0_i32_0 = arith.constant 0 : i32
    %2 = arith.cmpi ne, %1, %c0_i32_0 : i32
    scf.if %2 {
      %cst_10 = arith.constant 0.000000e+00 : f32
      %13 = vector.broadcast %cst_10 : f32 to vector<16x32xf32>
      %c0_11 = arith.constant 0 : index
      %c0_12 = arith.constant 0 : index
      %14 = vector.load %arg7[%c0_11, %c0_12] : memref<16x32xf32, #tpu.memory_space<vmem>>, vector<16x32xf32>
      tpu.vector_store %arg7[%c0_11, %c0_12], %13 {strides = array<i32>} : memref<16x32xf32, #tpu.memory_space<vmem>>, vector<16x32xf32>,
    } else {
    }
    %c0 = arith.constant 0 : index
    %c0_1 = arith.constant 0 : index
    %3 = vector.load %arg7[%c0, %c0_1] : memref<16x32xf32, #tpu.memory_space<vmem>>, vector<16x32xf32>
    %c0_2 = arith.constant 0 : index
    %c0_3 = arith.constant 0 : index
    %4 = vector.load %arg3[%c0_2, %c0_3] : memref<16x32xf32, #tpu.memory_space<vmem>>, vector<16x32xf32>
    %5 = arith.truncf %4 : vector<16x32xf32> to vector<16x32xbf16>
    %c0_4 = arith.constant 0 : index
    %c0_5 = arith.constant 0 : index
    %6 = vector.load %arg4[%c0_4, %c0_5] : memref<32x32xbf16, #tpu.memory_space<vmem>>, vector<32x32xbf16>
    %cst = arith.constant dense<0.000000e+00> : vector<16x32xf32>
    %7 = tpu.matmul %5, %6, %cst {dimension_numbers = #tpu.dot_dimension_numbers<[1], [0], [0], [1], [0, 0, 1, 1], [], []>} : vector<16x32xbf16>, vector<32x32xbf16>, vector<16x32xf32> -> vector<16x32xf32>
    %8 = arith.addf %3, %7 : vector<16x32xf32>
    %c0_6 = arith.constant 0 : index
    %c0_7 = arith.constant 0 : index
    %9 = vector.load %arg7[%c0_6, %c0_7] : memref<16x32xf32, #tpu.memory_space<vmem>>, vector<16x32xf32>
    tpu.vector_store %arg7[%c0_6, %c0_7], %8 {strides = array<i32>} : memref<16x32xf32, #tpu.memory_space<vmem>>, vector<16x32xf32>,
    %c0_i32_8 = arith.constant 0 : i32
    %10 = arith.cmpi eq, %arg2, %c0_i32_8 : i32
    %11 = arith.extui %10 : i1 to i32
    %c0_i32_9 = arith.constant 0 : i32
    %12 = arith.cmpi ne, %11, %c0_i32_9 : i32
    scf.if %12 {
      %c0_10 = arith.constant 0 : index
      %c0_11 = arith.constant 0 : index
      %13 = vector.load %arg7[%c0_10, %c0_11] : memref<16x32xf32, #tpu.memory_space<vmem>>, vector<16x32xf32>
      %c0_12 = arith.constant 0 : index
      %c0_13 = arith.constant 0 : index
      %14 = vector.load %arg5[%c0_12, %c0_13] : memref<1x32xf32, #tpu.memory_space<vmem>>, vector<1x32xf32>
      %15 = vector.broadcast %14 : vector<1x32xf32> to vector<16x32xf32>
      %16 = arith.addf %13, %15 : vector<16x32xf32>
      %17 = arith.truncf %16 : vector<16x32xf32> to vector<16x32xbf16>
      %c0_14 = arith.constant 0 : index
      %c0_15 = arith.constant 0 : index
      %18 = vector.load %arg6[%c0_14, %c0_15] : memref<16x32xbf16, #tpu.memory_space<vmem>>, vector<16x32xbf16>
      tpu.vector_store %arg6[%c0_14, %c0_15], %17 {strides = array<i32>} : memref<16x32xbf16, #tpu.memory_space<vmem>>, vector<16x32xbf16>,
    } else {
    }
    return
  }
  func.func @transform_0(%arg0: i32, %arg1: i32, %arg2: i32) -> (i32, i32) {
    %c0_i32 = arith.constant 0 : i32
    return %arg0, %arg2 : i32, i32
  }
  func.func @transform_1(%arg0: i32, %arg1: i32, %arg2: i32) -> (i32, i32) {
    %c0_i32 = arith.constant 0 : i32
    return %arg2, %arg1 : i32, i32
  }
  func.func @transform_2(%arg0: i32, %arg1: i32, %arg2: i32) -> (i32, i32) {
    %c0_i32 = arith.constant 0 : i32
    %c0_i32_0 = arith.constant 0 : i32
    return %c0_i32, %arg1 : i32, i32
  }
  func.func @transform_3(%arg0: i32, %arg1: i32, %arg2: i32) -> (i32, i32) {
    %c0_i32 = arith.constant 0 : i32
    return %arg0, %arg1 : i32, i32
  }
}

</mosaic_0001>

<llo_original>
// kernel: tpu_custom_call.1
$region0: #{tpu_custom_call.1}
  #allocation0 [shape = 'u32[]', space=smem, size = 0x4, offset = 0x4, fixed_abs, tag = 'smem constant byte address 0x4 - core index']
  #allocation1 [shape = 'u32[144,128]{1,0:T(1,128)}', space=vmem, size = 0x12000, scoped, tag = 'internal scratch']
  #allocation2 [shape = 'f32[16,32]{1,0:T(8,128)}', space=vmem, size = 0x2000, scoped, tag = 'scratch operand']
  %s0 = inlined_call_operand.hbm [shape: f32[16,32], index: 0, kind: input, shape index: {}]
  %s1 = inlined_call_operand.hbm [shape: bf16[32,32], index: 1, kind: input, shape index: {}]
  %s2 = inlined_call_operand.vmem [shape: f32[1,32], index: 2, kind: input, shape index: {}]
  %s3 = inlined_call_operand.hbm [shape: bf16[16,32], index: 3, kind: output, shape index: {}]
  %s4 = sld [smem:[#allocation0]]
  $region38: #{tpu_custom_call.1} parent=0
    _
  %s6 = ssub.s32 1, %s4
  %s7 = scalar_select 0, %s6, %s4
  $region1: #{tpu_custom_call.1} parent=0
    #allocation3 [shape = 'u8[8192]{0}', space=vmem, size = 0x2000, scoped, tag = 'input window, operand 0, single buffered']
    #allocation4 [shape = 's32[1]{0}', space=sflag, size = 0x4, scoped, tag = 'scoped memory for tpu_custom_call.1']
    #allocation5 [shape = 's32[1]{0}', space=sflag, size = 0x4, scoped, tag = 'scoped memory for tpu_custom_call.1']
    #allocation6 [shape = 'u8[8192]{0}', space=vmem, size = 0x2000, scoped, tag = 'input window, operand 1, single buffered']
    #allocation7 [shape = 's32[1]{0}', space=sflag, size = 0x4, scoped, tag = 'scoped memory for tpu_custom_call.1']
    #allocation8 [shape = 'u8[4096]{0}', space=vmem, size = 0x1000, scoped, tag = 'output window, operand 0, single buffered']
    %8 = vsyncpa [#allocation4], 0
    %9 = vsyncpa [#allocation7], 0
    %10 = vsyncpa [#allocation5], 0
    // Predicated region
    $region2: #{tpu_custom_call.1} parent=1 // pred_check
      _
    $region3: #{tpu_custom_call.1} parent=1 // pred_check_branch
      %12 = sbr.rel (0) target = $region5
    $region4: #{tpu_custom_call.1} parent=1 // pred_region
      %s14 = ssub.s32 256, 256
      %15 = vsyncadd [#allocation4], %s14
      %s16 = sshll.u32 [#allocation3], 4
      %s17 = int_to_ptr.vmem [resolvable:$true] %s16
      %22 = dma.hbm_to_vmem [thread:$0]  %s0, 256, %s17, [#allocation4], 128, 128, 8
    $region5: #{tpu_custom_call.1} parent=1 // pred_fallthru
      _
    // Predicated region
    $region6: #{tpu_custom_call.1} parent=1 // pred_check
      _
    $region7: #{tpu_custom_call.1} parent=1 // pred_check_branch
      %24 = sbr.rel (0) target = $region9
    $region8: #{tpu_custom_call.1} parent=1 // pred_region
      %s26 = ssub.s32 256, 256
      %27 = vsyncadd [#allocation7], %s26
      %s28 = sshll.u32 [#allocation6], 4
      %s29 = int_to_ptr.vmem [resolvable:$true] %s28
      %34 = dma.hbm_to_vmem [thread:$0]  %s1, 256, %s29, [#allocation7], 64, 64, 4
    $region9: #{tpu_custom_call.1} parent=1 // pred_fallthru
      _
    // Predicated region
    $region10: #{tpu_custom_call.1} parent=1 // pred_check
      _
    $region11: #{tpu_custom_call.1} parent=1 // pred_check_branch
      %36 = sbr.rel (0) target = $region13
    $region12: #{tpu_custom_call.1} parent=1 // pred_region
      _
    $region13: #{tpu_custom_call.1} parent=1 // pred_fallthru
      _
    // Predicated region
    $region14: #{tpu_custom_call.1} parent=1 // pred_check
      _
    $region15: #{tpu_custom_call.1} parent=1 // pred_check_branch
      %38 = sbr.rel (0) target = $region17
    $region16: #{tpu_custom_call.1} parent=1 // pred_region
      %39 = dma.done [#allocation4], 256
    $region17: #{tpu_custom_call.1} parent=1 // pred_fallthru
      _
    // Predicated region
    $region18: #{tpu_custom_call.1} parent=1 // pred_check
      _
    $region19: #{tpu_custom_call.1} parent=1 // pred_check_branch
      %41 = sbr.rel (0) target = $region21
    $region20: #{tpu_custom_call.1} parent=1 // pred_region
      %42 = dma.done [#allocation7], 256
    $region21: #{tpu_custom_call.1} parent=1 // pred_fallthru
      _
    %p44 = scmp.eq.s32.totalorder 0, 0
    // Predicated region
    $region22: #{tpu_custom_call.1} parent=1 // pred_check
      %p45 = pneg %p44
    $region23: #{tpu_custom_call.1} parent=1 // pred_check_branch
      %47 = sbr.rel (%p45) target = $region25
    $region24: #{tpu_custom_call.1} parent=1 // pred_region
      %vm48 = vcmask 261120
      %49 = vst.msk [vmem:[#allocation2] sm:$0xff] %vm48, 0.0
      %50 = vst.msk [vmem:[#allocation2 + $0x8] sm:$0xff] %vm48, 0.0
    $region25: #{tpu_custom_call.1} parent=1 // pred_fallthru
      _
    %v51 = vld [vmem:[#allocation2] sm:$0xff]
    %v52 = vld [vmem:[#allocation2 + $0x8] sm:$0xff]
    %v53 = vld [vmem:[#allocation3] sm:$0xff]
    %v54 = vld [vmem:[#allocation3 + $0x8] sm:$0xff]
    %v55 = vpack.c.bf16 %v54, %v53
    %v56 = vld [vmem:[#allocation6] sm:$0xf]
    %v57 = vld [vmem:[#allocation6 + $0x4] sm:$0xf]
    %v58 = vld [vmem:[#allocation6 + $0x8] sm:$0xf]
    %v59 = vld [vmem:[#allocation6 + $0xc] sm:$0xf]
    %v64 = vunpack.c.l.b16 %v56
    %v65 = vunpack.c.l.b16 %v57
    %v66 = vunpack.c.l.b16 %v58
    %v67 = vunpack.c.l.b16 %v59
    %v68 = vpack.c.b16 %v65, %v64
    %v69 = vpack.c.b16 %v67, %v66
    %vm72 = vcmask 261120
    %v74 = vsel %vm72, %v55, 0
    %76 = vmatprep.subr.bf16.mxu0 0
    %77 = vmatpush1.bf16.msra.mxu0 %v68
    %78 = vmatprep.subr.bf16.mxu0 0
    %79 = vmatpush1.bf16.msra.mxu0 %v69
    %80 = vmatprep.subr.bf16.mxu0 0
    %81 = vmatpush1.bf16.msra.mxu0 0
    %82 = vmatprep.subr.bf16.mxu0 0
    %83 = vmatpush1.bf16.msra.mxu0 0
    %84 = vmatprep.subr.bf16.mxu0 0
    %85 = vmatpush1.bf16.msra.mxu0 0
    %86 = vmatprep.subr.bf16.mxu0 0
    %87 = vmatpush1.bf16.msra.mxu0 0
    %88 = vmatprep.subr.bf16.mxu0 0
    %89 = vmatpush1.bf16.msra.mxu0 0
    %90 = vmatprep.subr.bf16.mxu0 0
    %91 = vmatpush1.bf16.msra.mxu0 0
    %92 = vmatprep.subr.bf16.mxu0 0
    %93 = vmatpush1.bf16.msra.mxu0 0
    %94 = vmatprep.subr.bf16.mxu0 0
    %95 = vmatpush1.bf16.msra.mxu0 0
    %96 = vmatprep.subr.bf16.mxu0 0
    %97 = vmatpush1.bf16.msra.mxu0 0
    %98 = vmatprep.subr.bf16.mxu0 0
    %99 = vmatpush1.bf16.msra.mxu0 0
    %100 = vmatprep.subr.bf16.mxu0 0
    %101 = vmatpush1.bf16.msra.mxu0 0
    %102 = vmatprep.subr.bf16.mxu0 0
    %103 = vmatpush1.bf16.msra.mxu0 0
    %104 = vmatprep.subr.bf16.mxu0 0
    %105 = vmatpush1.bf16.msra.mxu0 0
    %106 = vmatprep.subr.bf16.mxu0 0
    %107 = vmatpush1.bf16.msra.mxu0 0
    %108 = vmatprep.mubr.bf16.mxu0 0
    %109 = vmatmul.mubr.bf16.gmra.mrb[0].mxu0 %v74
    %v110 = vpop.f32.mrb[0].mxu0
    %v111 = vadd.f32 0.0, %v110
    %v112 = vpop.f32.mrb[0].mxu0
    %v113 = vpop.f32.mrb[0].mxu0
    %v114 = vadd.f32 0.0, %v113
    %v115 = vpop.f32.mrb[0].mxu0
    %116 = vdwg.mxu0
    %v117 = vadd.f32 %v51, %v111
    %v118 = vadd.f32 %v52, %v114
    %119 = vst.msk [vmem:[#allocation2] sm:$0xff] %vm72, %v117
    %120 = vst.msk [vmem:[#allocation2 + $0x8] sm:$0xff] %vm72, %v118
    // Predicated region
    $region26: #{tpu_custom_call.1} parent=1 // pred_check
      %p121 = pneg %p44
    $region27: #{tpu_custom_call.1} parent=1 // pred_check_branch
      %123 = sbr.rel (%p121) target = $region29
    $region28: #{tpu_custom_call.1} parent=1 // pred_region
      %v124 = vld [vmem:[#allocation2] sm:$0xff]
      %v125 = vld [vmem:[#allocation2 + $0x8] sm:$0xff]
      %v126 = vld [vmem:[%s2] sm:$0x1]
      %v128 = vlaneseq
      %v129 = vshrl.u32 %v128, 7
      %v130 = vsub.s32 0, %v129
      %v131 = vrot.slane %v126, %v130
      %v133 = vadd.f32 %v124, %v131
      %v134 = vadd.f32 %v125, %v131
      %v135 = vpack.c.bf16 %v134, %v133
      %v137 = vunpack.c.l.b16 %v135
      %v138 = vunpack.c.h.b16 %v135
      %v139 = vpack.c.b16 %v137, %v137
      %v140 = vpack.c.b16 %v138, %v138
      %vm143 = vcmask 257024
      %144 = vst.msk [vmem:[#allocation8] sm:$0xf] %vm143, %v139
      %145 = vst.msk [vmem:[#allocation8 + $0x4] sm:$0xf] %vm143, %v140
    $region29: #{tpu_custom_call.1} parent=1 // pred_fallthru
      _
    // Predicated region
    $region30: #{tpu_custom_call.1} parent=1 // pred_check
      _
    $region31: #{tpu_custom_call.1} parent=1 // pred_check_branch
      %147 = sbr.rel (0) target = $region33
    $region32: #{tpu_custom_call.1} parent=1 // pred_region
      %s149 = ssub.s32 128, 128
      %150 = vsyncadd [#allocation5], %s149
      %s151 = sshll.u32 [#allocation8], 4
      %s152 = int_to_ptr.vmem [resolvable:$true] %s151
      %157 = dma.vmem_to_hbm [thread:$0]  %s152, 128, %s3, [#allocation5], 64, 64, 4
    $region33: #{tpu_custom_call.1} parent=1 // pred_fallthru
      _
    // Predicated region
    $region34: #{tpu_custom_call.1} parent=1 // pred_check
      _
    $region35: #{tpu_custom_call.1} parent=1 // pred_check_branch
      %159 = sbr.rel (0) target = $region37
    $region36: #{tpu_custom_call.1} parent=1 // pred_region
      %160 = dma.done [#allocation5], 128
    $region37: #{tpu_custom_call.1} parent=1 // pred_fallthru
      _
    %161 = vsyncpa [#allocation4], 1
    %162 = vsyncpa [#allocation7], 1
    %163 = vsyncpa [#allocation5], 1

</llo_original>
